<compile_context>
chip_gen: v7x
topology: tpu7x:2x2x1
jax: 0.10.0
libtpu: 0.0.40
codegen_flags: <defaults>
</compile_context>

<pallas_src>
import functools

import jax
import jax.numpy as jnp
from jax.experimental import pallas as pl
from jax.experimental.pallas import tpu as pltpu

EPS = 1e-5            # nn.BatchNorm1d default eps
NEG_SLOPE = 0.1       # nn.LeakyReLU(0.1)

VMEM_TILE_BUDGET = 20 * 1024 * 1024   # budget used when picking tn
VMEM_LIMIT_BYTES = 32 * 1024 * 1024   # explicit scoped-VMEM limit (safe on v5e/v6e/v7x)


def _leaky_relu(v):
    return jnp.where(v >= 0, v, NEG_SLOPE * v)


def _fused_resblock_kernel(slab_ref, x_ref, w_ref, o_ref, a1_ref):
    """Fused Linear->BN(train)->LeakyReLU->Linear->BN(train)->(+x)->LeakyReLU.

    grid = (stage, N_tile):
      stage 0: a1[:, tile] = LeakyReLU(BN1(x @ w1T[:, tile]))
      stage 1: o[:, tile]  = LeakyReLU(x[:, tile] + BN2(a1 @ w2T[:, tile]))
    Linear biases are omitted: they cancel exactly under training-mode BN.
    """
    s = pl.program_id(0)
    j = pl.program_id(1)
    tn = o_ref.shape[1]
    col = pl.multiple_of(j * tn, 128)   # lane-aligned column offset of this tile

    def bn(h, gamma, beta):
        # BatchNorm1d training mode: batch mean, biased batch variance.
        mu = jnp.mean(h, axis=0, keepdims=True)
        c = h - mu
        var = jnp.mean(c * c, axis=0, keepdims=True)
        scale = gamma * jax.lax.rsqrt(var + EPS)   # gamma folded into rsqrt
        return c * scale + beta

    @pl.when(s == 0)
    def _stage1():
        xin = x_ref[...].astype(w_ref.dtype)
        h = jnp.dot(xin, w_ref[...], preferred_element_type=jnp.float32)
        y = bn(h, slab_ref[0:1, :], slab_ref[1:2, :])
        act = _leaky_relu(y)
        a1_ref[:, pl.ds(col, tn)] = act
        # Deterministic placeholder; overwritten by stage 2 for this block.
        o_ref[...] = act.astype(o_ref.dtype)

    @pl.when(s == 1)
    def _stage2():
        a1 = a1_ref[...].astype(w_ref.dtype)
        h = jnp.dot(a1, w_ref[...], preferred_element_type=jnp.float32)
        y = bn(h, slab_ref[2:3, :], slab_ref[3:4, :])
        y = x_ref[:, pl.ds(col, tn)] + y          # residual add in f32
        o_ref[...] = _leaky_relu(y).astype(o_ref.dtype)


def _pick_tile_n(Fp, B, mm_bytes, budget, cap=None):
    """Largest divisor-of-Fp output tile whose VMEM footprint fits the budget."""
    cands = [c for c in (Fp, 1024, 512, 256, 128) if c <= Fp and Fp % c == 0]
    if cap is not None:
        capped = [c for c in cands if c <= cap]
        cands = capped if capped else [128]
    for tn in cands:
        need = (2 * Fp * tn * mm_bytes      # double-buffered weight tile
                + B * Fp * 4                # resident x (f32)
                + B * Fp * 4                # a1 scratch (f32)
                + 2 * B * tn * 4            # double-buffered output tile
                + 2 * 8 * tn * 4)           # double-buffered slab tile
        if need <= budget:
            return tn
    return cands[-1]


@functools.partial(jax.jit, static_argnames=("features", "max_tile_n"))
def _forward_jit(x, w_stack, slab, *, features, max_tile_n=None):
    B = x.shape[0]
    Fp = w_stack.shape[1]
    mm_bytes = jnp.dtype(w_stack.dtype).itemsize
    tn = _pick_tile_n(Fp, B, mm_bytes, VMEM_TILE_BUDGET, cap=max_tile_n)
    nt = Fp // tn

    xp = jnp.pad(x.astype(jnp.float32), ((0, 0), (0, Fp - features)))

    out = pl.pallas_call(
        _fused_resblock_kernel,
        out_shape=jax.ShapeDtypeStruct((B, Fp), jnp.float32),
        grid_spec=pltpu.PrefetchScalarGridSpec(
            num_scalar_prefetch=0,
            grid=(2, nt),                                       # (stage, N tile)
            in_specs=[
                pl.BlockSpec((8, tn), lambda s, j: (0, j)),     # gamma/beta slab
                pl.BlockSpec((B, Fp), lambda s, j: (0, 0)),     # x, resident (f32)
                pl.BlockSpec((None, Fp, tn),                    # stacked wT tiles
                             lambda s, j: (s, 0, j)),
            ],
            out_specs=pl.BlockSpec((B, tn), lambda s, j: (0, j)),
            scratch_shapes=[pltpu.VMEM((B, Fp), jnp.float32)],  # a1 (stage-1 act)
        ),
        compiler_params=pltpu.CompilerParams(
            dimension_semantics=("arbitrary", "arbitrary"),
            vmem_limit_bytes=VMEM_LIMIT_BYTES),
    )(slab, xp, w_stack)

    return out[:, :features].astype(x.dtype)


def make_residual_block(params, features, *, matmul_dtype=jnp.bfloat16,
                        max_tile_n=None):
    """One-time parameter prep (hoisted out of the forward path) + forward fn."""
    Fp = ((features + 127) // 128) * 128
    pad = Fp - features

    def prep_w(w):
        # PyTorch [out, in] -> padded -> transposed to [in, out] -> matmul dtype.
        return jnp.pad(w, ((0, pad), (0, pad))).T.astype(matmul_dtype)

    w_stack = jnp.stack([prep_w(params["w1"]), prep_w(params["w2"])], axis=0)

    def vec(name):
        return jnp.pad(params[name].astype(jnp.float32), (0, pad))

    zeros = jnp.zeros((Fp,), jnp.float32)
    # Linear biases b1/b2 are intentionally excluded: they cancel under
    # training-mode BatchNorm (mean subtraction).
    slab = jnp.stack([vec("gamma1"), vec("beta1"), vec("gamma2"), vec("beta2"),
                      zeros, zeros, zeros, zeros], axis=0)

    w_stack = jax.device_put(w_stack)
    slab = jax.device_put(slab)

    def forward(x):
        return _forward_jit(x, w_stack, slab,
                            features=features, max_tile_n=max_tile_n)

    return forward


def init_params(key, features):
    """Deterministic synthetic parameters (same shapes as the PyTorch module)."""
    k1, k2, k3, k4 = jax.random.split(key, 4)
    bound = 1.0 / jnp.sqrt(features)
    return {
        # nn.Linear(F, F): weight [F_out, F_in], bias [F]
        "w1": jax.random.uniform(k1, (features, features), jnp.float32, -bound, bound),
        "b1": jax.random.uniform(k2, (features,), jnp.float32, -bound, bound),
        "w2": jax.random.uniform(k3, (features, features), jnp.float32, -bound, bound),
        "b2": jax.random.uniform(k4, (features,), jnp.float32, -bound, bound),
        # nn.BatchNorm1d affine params
        "gamma1": jnp.ones((features,), jnp.float32),
        "beta1": jnp.zeros((features,), jnp.float32),
        "gamma2": jnp.ones((features,), jnp.float32),
        "beta2": jnp.zeros((features,), jnp.float32),
    }


def _reference(x, p):
    """Pure-JAX reference matching PyTorch training-mode forward (with biases)."""
    h1 = x @ p["w1"].T + p["b1"]
    mu1 = h1.mean(0, keepdims=True)
    var1 = ((h1 - mu1) ** 2).mean(0, keepdims=True)
    bn1 = p["gamma1"] * (h1 - mu1) / jnp.sqrt(var1 + EPS) + p["beta1"]
    a1 = jnp.where(bn1 >= 0, bn1, NEG_SLOPE * bn1)
    h2 = a1 @ p["w2"].T + p["b2"]
    mu2 = h2.mean(0, keepdims=True)
    var2 = ((h2 - mu2) ** 2).mean(0, keepdims=True)
    bn2 = p["gamma2"] * (h2 - mu2) / jnp.sqrt(var2 + EPS) + p["beta2"]
    y = x + bn2
    return jnp.where(y >= 0, y, NEG_SLOPE * y)


if __name__ == "__main__":
    key = jax.random.PRNGKey(0)
    kx, kp, kx2, kp2 = jax.random.split(key, 4)

    # Config 1: small module-typical size (F=32 -> Fp=128), f32 weights,
    # single N tile per stage (tn = Fp, no K axis).
    B, F = 8, 32
    x = jax.random.normal(kx, (B, F), jnp.float32)
    params = init_params(kp, F)
    fwd_f32 = make_residual_block(params, F, matmul_dtype=jnp.float32)
    out = jax.block_until_ready(fwd_f32(x))
    ref = _reference(x, params)
    assert out.shape == (B, F)
    assert jnp.allclose(out, ref, atol=1e-4, rtol=1e-4), "f32 mismatch (F=32)"

    # Config 2: F=160 -> Fp=256, f32 weights, forced tn=128 so the grid has
    # 2 N tiles per stage (exercises the dynamic column-slice / multi-tile path).
    B2, F2 = 8, 160
    x2 = jax.random.normal(kx2, (B2, F2), jnp.float32)
    params2 = init_params(kp2, F2)
    fwd2 = make_residual_block(params2, F2, matmul_dtype=jnp.float32,
                               max_tile_n=128)
    out2 = jax.block_until_ready(fwd2(x2))
    ref2 = _reference(x2, params2)
    assert out2.shape == (B2, F2)
    assert jnp.allclose(out2, ref2, atol=5e-4, rtol=1e-3), "f32 mismatch (F=160)"

    # Config 3: default bf16 weights (bandwidth-bound default); BN math, the
    # residual add and accumulation stay f32.  Loose tolerance is the stated
    # precision contract for the bf16 path.
    fwd_bf16 = make_residual_block(params, F)   # matmul_dtype defaults to bf16
    out_bf16 = jax.block_until_ready(fwd_bf16(x))
    assert out_bf16.shape == (B, F)
    assert float(jnp.max(jnp.abs(out_bf16 - ref))) < 0.25, "bf16 path too far off"

    print("KERNEL_OK")
</pallas_src>

<mosaic_0001>
module attributes {stable_mosaic.version = 11 : i64} {
  func.func @_fused_resblock_kernel(%arg0: i32, %arg1: i32, %arg2: memref<8x128xf32, #tpu.memory_space<vmem>>, %arg3: memref<8x128xf32, #tpu.memory_space<vmem>>, %arg4: memref<1x128x128xf32, #tpu.memory_space<vmem>>, %arg5: memref<8x128xf32, #tpu.memory_space<vmem>>, %arg6: memref<8x128xf32, #tpu.memory_space<vmem>>) attributes {dimension_semantics = [#tpu.dimension_semantics<arbitrary>, #tpu.dimension_semantics<arbitrary>], iteration_bounds = array<i64: 2, 1>, scalar_prefetch = 0 : i64, scratch_operands = 1 : i64, tpu.core_type = #tpu.core_type<tc>, window_params = [{transform_indices = @transform_0, window_bounds = array<i64: 8, 128>}, {pipeline_mode = #tpu.pipeline_mode<synchronous>, transform_indices = @transform_1, window_bounds = array<i64: 8, 128>}, {transform_indices = @transform_2, window_bounds = array<i64: 1, 128, 128>}, {transform_indices = @transform_3, window_bounds = array<i64: 8, 128>}]} {
    %c128_i32 = arith.constant 128 : i32
    %0 = arith.muli %arg1, %c128_i32 : i32
    %1 = tpu.assume_multiple %0, 128 : i32
    %c0_i32 = arith.constant 0 : i32
    %2 = arith.cmpi eq, %arg0, %c0_i32 : i32
    %3 = arith.extui %2 : i1 to i32
    %c0_i32_0 = arith.constant 0 : i32
    %4 = arith.cmpi ne, %3, %c0_i32_0 : i32
    scf.if %4 {
      %c0 = arith.constant 0 : index
      %c0_2 = arith.constant 0 : index
      %8 = vector.load %arg3[%c0, %c0_2] : memref<8x128xf32, #tpu.memory_space<vmem>>, vector<8x128xf32>
      %c0_3 = arith.constant 0 : index
      %c0_4 = arith.constant 0 : index
      %c0_5 = arith.constant 0 : index
      %9 = vector.load %arg4[%c0_3, %c0_4, %c0_5] : memref<1x128x128xf32, #tpu.memory_space<vmem>>, vector<1x128x128xf32>
      %10 = vector.shape_cast %9 : vector<1x128x128xf32> to vector<128x128xf32>
      %cst = arith.constant dense<0.000000e+00> : vector<8x128xf32>
      %11 = tpu.matmul %8, %10, %cst {dimension_numbers = #tpu.dot_dimension_numbers<[1], [0], [0], [1], [0, 0, 1, 1], [], []>} : vector<8x128xf32>, vector<128x128xf32>, vector<8x128xf32> -> vector<8x128xf32>
      %c0_6 = arith.constant 0 : index
      %c0_7 = arith.constant 0 : index
      %12 = vector.load %arg2[%c0_6, %c0_7] : memref<8x128xf32, #tpu.memory_space<vmem>>, vector<1x128xf32>
      %c1 = arith.constant 1 : index
      %c0_8 = arith.constant 0 : index
      %13 = vector.load %arg2[%c1, %c0_8] : memref<8x128xf32, #tpu.memory_space<vmem>>, vector<1x128xf32>
      %cst_9 = arith.constant dense<0.000000e+00> : vector<128xf32>
      %14 = vector.multi_reduction <add>, %11, %cst_9 [0] : vector<8x128xf32> to vector<128xf32>
      %15 = vector.shape_cast %14 : vector<128xf32> to vector<1x128xf32>
      %cst_10 = arith.constant 8.000000e+00 : f32
      %16 = vector.broadcast %cst_10 : f32 to vector<1x128xf32>
      %17 = arith.divf %15, %16 : vector<1x128xf32>
      %18 = vector.broadcast %17 : vector<1x128xf32> to vector<8x128xf32>
      %19 = arith.subf %11, %18 : vector<8x128xf32>
      %20 = arith.mulf %19, %19 : vector<8x128xf32>
      %cst_11 = arith.constant dense<0.000000e+00> : vector<128xf32>
      %21 = vector.multi_reduction <add>, %20, %cst_11 [0] : vector<8x128xf32> to vector<128xf32>
      %22 = vector.shape_cast %21 : vector<128xf32> to vector<1x128xf32>
      %cst_12 = arith.constant 8.000000e+00 : f32
      %23 = vector.broadcast %cst_12 : f32 to vector<1x128xf32>
      %24 = arith.divf %22, %23 : vector<1x128xf32>
      %cst_13 = arith.constant 9.99999974E-6 : f32
      %25 = vector.broadcast %cst_13 : f32 to vector<1x128xf32>
      %26 = arith.addf %24, %25 : vector<1x128xf32>
      %27 = math.rsqrt %26 : vector<1x128xf32>
      %28 = arith.mulf %12, %27 : vector<1x128xf32>
      %29 = vector.broadcast %28 : vector<1x128xf32> to vector<8x128xf32>
      %30 = arith.mulf %19, %29 : vector<8x128xf32>
      %31 = vector.broadcast %13 : vector<1x128xf32> to vector<8x128xf32>
      %32 = arith.addf %30, %31 : vector<8x128xf32>
      %cst_14 = arith.constant 0.000000e+00 : f32
      %33 = vector.broadcast %cst_14 : f32 to vector<8x128xf32>
      %34 = arith.cmpf oge, %32, %33 : vector<8x128xf32>
      %cst_15 = arith.constant 1.000000e-01 : f32
      %35 = vector.broadcast %cst_15 : f32 to vector<8x128xf32>
      %36 = arith.mulf %35, %32 : vector<8x128xf32>
      %37 = arith.select %34, %32, %36 : vector<8x128xi1>, vector<8x128xf32>
      %c0_16 = arith.constant 0 : index
      %38 = arith.index_cast %1 : i32 to index
      %39 = vector.load %arg6[%c0_16, %38] : memref<8x128xf32, #tpu.memory_space<vmem>>, vector<8x128xf32>
      tpu.vector_store %arg6[%c0_16, %38], %37 {strides = array<i32>} : memref<8x128xf32, #tpu.memory_space<vmem>>, vector<8x128xf32>,
      %c0_17 = arith.constant 0 : index
      %c0_18 = arith.constant 0 : index
      %40 = vector.load %arg5[%c0_17, %c0_18] : memref<8x128xf32, #tpu.memory_space<vmem>>, vector<8x128xf32>
      tpu.vector_store %arg5[%c0_17, %c0_18], %37 {strides = array<i32>} : memref<8x128xf32, #tpu.memory_space<vmem>>, vector<8x128xf32>,
    } else {
    }
    %c1_i32 = arith.constant 1 : i32
    %5 = arith.cmpi eq, %arg0, %c1_i32 : i32
    %6 = arith.extui %5 : i1 to i32
    %c0_i32_1 = arith.constant 0 : i32
    %7 = arith.cmpi ne, %6, %c0_i32_1 : i32
    scf.if %7 {
      %c0 = arith.constant 0 : index
      %c0_2 = arith.constant 0 : index
      %8 = vector.load %arg6[%c0, %c0_2] : memref<8x128xf32, #tpu.memory_space<vmem>>, vector<8x128xf32>
      %c0_3 = arith.constant 0 : index
      %c0_4 = arith.constant 0 : index
      %c0_5 = arith.constant 0 : index
      %9 = vector.load %arg4[%c0_3, %c0_4, %c0_5] : memref<1x128x128xf32, #tpu.memory_space<vmem>>, vector<1x128x128xf32>
      %10 = vector.shape_cast %9 : vector<1x128x128xf32> to vector<128x128xf32>
      %cst = arith.constant dense<0.000000e+00> : vector<8x128xf32>
      %11 = tpu.matmul %8, %10, %cst {dimension_numbers = #tpu.dot_dimension_numbers<[1], [0], [0], [1], [0, 0, 1, 1], [], []>} : vector<8x128xf32>, vector<128x128xf32>, vector<8x128xf32> -> vector<8x128xf32>
      %c2 = arith.constant 2 : index
      %c0_6 = arith.constant 0 : index
      %12 = vector.load %arg2[%c2, %c0_6] : memref<8x128xf32, #tpu.memory_space<vmem>>, vector<1x128xf32>
      %c3 = arith.constant 3 : index
      %c0_7 = arith.constant 0 : index
      %13 = vector.load %arg2[%c3, %c0_7] : memref<8x128xf32, #tpu.memory_space<vmem>>, vector<1x128xf32>
      %cst_8 = arith.constant dense<0.000000e+00> : vector<128xf32>
      %14 = vector.multi_reduction <add>, %11, %cst_8 [0] : vector<8x128xf32> to vector<128xf32>
      %15 = vector.shape_cast %14 : vector<128xf32> to vector<1x128xf32>
      %cst_9 = arith.constant 8.000000e+00 : f32
      %16 = vector.broadcast %cst_9 : f32 to vector<1x128xf32>
      %17 = arith.divf %15, %16 : vector<1x128xf32>
      %18 = vector.broadcast %17 : vector<1x128xf32> to vector<8x128xf32>
      %19 = arith.subf %11, %18 : vector<8x128xf32>
      %20 = arith.mulf %19, %19 : vector<8x128xf32>
      %cst_10 = arith.constant dense<0.000000e+00> : vector<128xf32>
      %21 = vector.multi_reduction <add>, %20, %cst_10 [0] : vector<8x128xf32> to vector<128xf32>
      %22 = vector.shape_cast %21 : vector<128xf32> to vector<1x128xf32>
      %cst_11 = arith.constant 8.000000e+00 : f32
      %23 = vector.broadcast %cst_11 : f32 to vector<1x128xf32>
      %24 = arith.divf %22, %23 : vector<1x128xf32>
      %cst_12 = arith.constant 9.99999974E-6 : f32
      %25 = vector.broadcast %cst_12 : f32 to vector<1x128xf32>
      %26 = arith.addf %24, %25 : vector<1x128xf32>
      %27 = math.rsqrt %26 : vector<1x128xf32>
      %28 = arith.mulf %12, %27 : vector<1x128xf32>
      %29 = vector.broadcast %28 : vector<1x128xf32> to vector<8x128xf32>
      %30 = arith.mulf %19, %29 : vector<8x128xf32>
      %31 = vector.broadcast %13 : vector<1x128xf32> to vector<8x128xf32>
      %32 = arith.addf %30, %31 : vector<8x128xf32>
      %c0_13 = arith.constant 0 : index
      %33 = arith.index_cast %1 : i32 to index
      %34 = vector.load %arg3[%c0_13, %33] : memref<8x128xf32, #tpu.memory_space<vmem>>, vector<8x128xf32>
      %35 = arith.addf %34, %32 : vector<8x128xf32>
      %cst_14 = arith.constant 0.000000e+00 : f32
      %36 = vector.broadcast %cst_14 : f32 to vector<8x128xf32>
      %37 = arith.cmpf oge, %35, %36 : vector<8x128xf32>
      %cst_15 = arith.constant 1.000000e-01 : f32
      %38 = vector.broadcast %cst_15 : f32 to vector<8x128xf32>
      %39 = arith.mulf %38, %35 : vector<8x128xf32>
      %40 = arith.select %37, %35, %39 : vector<8x128xi1>, vector<8x128xf32>
      %c0_16 = arith.constant 0 : index
      %c0_17 = arith.constant 0 : index
      %41 = vector.load %arg5[%c0_16, %c0_17] : memref<8x128xf32, #tpu.memory_space<vmem>>, vector<8x128xf32>
      tpu.vector_store %arg5[%c0_16, %c0_17], %40 {strides = array<i32>} : memref<8x128xf32, #tpu.memory_space<vmem>>, vector<8x128xf32>,
    } else {
    }
    return
  }
  func.func @transform_0(%arg0: i32, %arg1: i32) -> (i32, i32) {
    %c0_i32 = arith.constant 0 : i32
    %c0_i32_0 = arith.constant 0 : i32
    return %c0_i32, %arg1 : i32, i32
  }
  func.func @transform_1(%arg0: i32, %arg1: i32) -> (i32, i32) {
    %c0_i32 = arith.constant 0 : i32
    %c0_i32_0 = arith.constant 0 : i32
    %c0_i32_1 = arith.constant 0 : i32
    return %c0_i32, %c0_i32_0 : i32, i32
  }
  func.func @transform_2(%arg0: i32, %arg1: i32) -> (i32, i32, i32) {
    %c0_i32 = arith.constant 0 : i32
    %c0_i32_0 = arith.constant 0 : i32
    return %arg0, %c0_i32, %arg1 : i32, i32, i32
  }
  func.func @transform_3(%arg0: i32, %arg1: i32) -> (i32, i32) {
    %c0_i32 = arith.constant 0 : i32
    %c0_i32_0 = arith.constant 0 : i32
    return %c0_i32, %arg1 : i32, i32
  }
}

</mosaic_0001>

<llo_original>
// kernel: _forward_jit.1
$region0: #{_forward_jit.1}
  #allocation0 [shape = 'u32[]', space=smem, size = 0x4, offset = 0x4, fixed_abs, tag = 'smem constant byte address 0x4 - core index']
  #allocation1 [shape = 'u32[144,128]{1,0:T(1,128)}', space=vmem, size = 0x12000, scoped, tag = 'internal scratch']
  #allocation2 [shape = 'f32[8,128]{1,0:T(8,128)}', space=vmem, size = 0x1000, scoped, tag = 'scratch operand']
  %s0 = inlined_call_operand.vmem [shape: f32[8,128], index: 0, kind: input, shape index: {}]
  %s1 = inlined_call_operand.vmem [shape: f32[8,128], index: 1, kind: input, shape index: {}]
  %s2 = inlined_call_operand.hbm [shape: f32[2,128,128], index: 2, kind: input, shape index: {}]
  %s3 = inlined_call_operand.hbm [shape: f32[8,128], index: 3, kind: output, shape index: {}]
  %s4 = sld [smem:[#allocation0]]
  $region57: #{_forward_jit.1} parent=0
    _
  %s6 = ssub.s32 1, %s4
  %s7 = scalar_select 0, %s6, %s4
  $region1: #{_forward_jit.1} parent=0
    #allocation3 [shape = 'u8[131072]{0}', space=vmem, size = 0x20000, scoped, tag = 'input window, operand 2']
    #allocation4 [shape = 's32[2]{0}', space=sflag, size = 0x8, scoped, tag = 'scoped memory for _forward_jit.1']
    #allocation5 [shape = 's32[2]{0}', space=sflag, size = 0x8, scoped, tag = 'scoped memory for _forward_jit.1']
    #allocation6 [shape = 'u8[4096]{0}', space=vmem, size = 0x1000, scoped, tag = 'output window, operand 0, single buffered']
    %8 = vsyncpa [#allocation4], 0
    %s9 = scalar_lea.sflag [#allocation4], 1
    %10 = vsyncpa %s9, 0
    %11 = vsyncpa [#allocation5], 0
    loop: start=0, step=1, limit=4
    $region2: #{_forward_jit.1} parent=1 // loop_pre_header
      _
    $region3: #{_forward_jit.1} parent=1 // loop_header
      %s13 = sphi 0, %s17
      %p14 = scmp.ge.s32.totalorder %s13, 4
      %s20 = sphi 0, %s32
      %s21 = sphi 0, %s28
      %s22 = sphi 0, %s20
      %s23 = sphi 0, %s21
      %s24 = sphi 0, %s22
      %s25 = sphi 0, %s23
      %s35 = sphi 0, %s37
      %s38 = sphi 0, %s35
      %s39 = sphi 0, %s38
      %s55 = sphi 0, %s39
      %s59 = sphi 0, %s59
      %s61 = sphi 0, %s59
      %s62 = sphi 0, %s61
      %s76 = sphi 0, %s62
      %s84 = sphi 0, %s86
      %s87 = sphi 0, %s84
      %s88 = sphi 0, %s87
      %s104 = sphi 0, %s88
      %s110 = sphi 0, %s112
      %s113 = sphi 0, %s110
      %s114 = sphi 0, %s113
      %s130 = sphi 0, %s114
    $region4: #{_forward_jit.1} parent=1 // loop_header_branch
      %16 = sbr.rel (%p14) target = $region8
    $region5: #{_forward_jit.1} parent=1 // loop_body
      %s18 = ssub.s32 %s13, 1
      %s19 = ssub.s32 %s13, 2
      %s26 = sadd.s32 1, %s21
      %p27 = scmp.ge.s32.totalorder %s26, 1
      %s28 = scalar_select %p27, 0, %s26
      %s29 = sadd.s32 1, %s20
      %s30 = scalar_select %p27, %s29, %s20
      %p31 = scmp.ge.s32.totalorder %s30, 2
      %s32 = scalar_select %p31, 0, %s30
      %s33 = ssub.s32 %s21, %s28
      %p34 = scmp.eq.s32.totalorder %s33, 0
      %s36 = sadd.s32 %s35, 1
      %s37 = scalar_select %p34, %s35, %s36
      %p40 = pneg %p34
      %p41 = scmp.eq.s32.totalorder %s13, 1
      %p42 = por %p40, %p41
      %p43 = scmp.ne.s32.totalorder %s35, %s38
      %p44 = scmp.eq.s32.totalorder %s13, 0
      %p45 = por %p43, %p44
      %p46 = scmp.ne.s32.totalorder %s35, %s38
      %p47 = scmp.eq.s32.totalorder %s18, 1
      %p48 = por %p46, %p47
      %p49 = scmp.ne.s32.totalorder %s38, %s39
      %p50 = scmp.eq.s32.totalorder %s18, 0
      %p51 = por %p49, %p50
      %p52 = scmp.ne.s32.totalorder %s38, %s39
      %p53 = scmp.eq.s32.totalorder %s19, 1
      %p54 = por %p52, %p53
      %p56 = scmp.ne.s32.totalorder %s39, %s55
      %p57 = scmp.eq.s32.totalorder %s19, 0
      %p58 = por %p56, %p57
      %s60 = sadd.s32 %s59, 1
      %p63 = scmp.eq.s32.totalorder %s13, 1
      %p64 = scmp.ne.s32.totalorder %s59, %s61
      %p65 = scmp.eq.s32.totalorder %s13, 0
      %p66 = por %p64, %p65
      %p67 = scmp.ne.s32.totalorder %s59, %s61
      %p68 = scmp.eq.s32.totalorder %s18, 1
      %p69 = por %p67, %p68
      %p70 = scmp.ne.s32.totalorder %s61, %s62
      %p71 = scmp.eq.s32.totalorder %s18, 0
      %p72 = por %p70, %p71
      %p73 = scmp.ne.s32.totalorder %s61, %s62
      %p74 = scmp.eq.s32.totalorder %s19, 1
      %p75 = por %p73, %p74
      %p77 = scmp.ne.s32.totalorder %s62, %s76
      %p78 = scmp.eq.s32.totalorder %s19, 0
      %p79 = por %p77, %p78
      %s80 = ssub.s32 %s20, %s32
      %s81 = ssub.s32 %s21, %s28
      %s82 = sor.u32 %s80, %s81
      %p83 = scmp.eq.s32.totalorder %s82, 0
      %s85 = sadd.s32 %s84, 1
      %s86 = scalar_select %p83, %s84, %s85
      %p89 = pneg %p83
      %p90 = scmp.eq.s32.totalorder %s13, 1
      %p91 = por %p89, %p90
      %p92 = scmp.ne.s32.totalorder %s84, %s87
      %p93 = scmp.eq.s32.totalorder %s13, 0
      %p94 = por %p92, %p93
      %p95 = scmp.ne.s32.totalorder %s84, %s87
      %p96 = scmp.eq.s32.totalorder %s18, 1
      %p97 = por %p95, %p96
      %p98 = scmp.ne.s32.totalorder %s87, %s88
      %p99 = scmp.eq.s32.totalorder %s18, 0
      %p100 = por %p98, %p99
      %p101 = scmp.ne.s32.totalorder %s87, %s88
      %p102 = scmp.eq.s32.totalorder %s19, 1
      %p103 = por %p101, %p102
      %p105 = scmp.ne.s32.totalorder %s88, %s104
      %p106 = scmp.eq.s32.totalorder %s19, 0
      %p107 = por %p105, %p106
      %s108 = ssub.s32 %s21, %s28
      %p109 = scmp.eq.s32.totalorder %s108, 0
      %s111 = sadd.s32 %s110, 1
      %s112 = scalar_select %p109, %s110, %s111
      %p115 = pneg %p109
      %p116 = scmp.eq.s32.totalorder %s13, 1
      %p117 = por %p115, %p116
      %p118 = scmp.ne.s32.totalorder %s110, %s113
      %p119 = scmp.eq.s32.totalorder %s13, 0
      %p120 = por %p118, %p119
      %p121 = scmp.ne.s32.totalorder %s110, %s113
      %p122 = scmp.eq.s32.totalorder %s18, 1
      %p123 = por %p121, %p122
      %p124 = scmp.ne.s32.totalorder %s113, %s114
      %p125 = scmp.eq.s32.totalorder %s18, 0
      %p126 = por %p124, %p125
      %p127 = scmp.ne.s32.totalorder %s113, %s114
      %p128 = scmp.eq.s32.totalorder %s19, 1
      %p129 = por %p127, %p128
      %p131 = scmp.ne.s32.totalorder %s114, %s130
      %p132 = scmp.eq.s32.totalorder %s19, 0
      %p133 = por %p131, %p132
      %p134 = scmp.le.s32.totalorder 1, %s13
      %p135 = scmp.lt.s32.totalorder %s13, 3
      %p136 = pnand %p134, %p135
      %p137 = pneg %p136
      // Predicated region
      $region9: #{_forward_jit.1} parent=5 // pred_check
        _
      $region10: #{_forward_jit.1} parent=5 // pred_check_branch
        %139 = sbr.rel (%p136) target = $region12
      $region11: #{_forward_jit.1} parent=5 // pred_region
        %s140 = ssub.s32 %s13, 1
        // Predicated region
        $region13: #{_forward_jit.1} parent=11 // pred_check
          %p141 = pneg %p51
        $region14: #{_forward_jit.1} parent=11 // pred_check_branch
          %143 = sbr.rel (%p141) target = $region16
        $region15: #{_forward_jit.1} parent=11 // pred_region
          %p144 = scmp.lt.s32.totalorder %s23, 0
          %s145 = scalar_select %p144, %s23, 0
          %s146 = smul.addr %s145, 8
          %s147 = scalar_lea.vmem %s0, %s146
        $region16: #{_forward_jit.1} parent=11 // pred_fallthru
          _
        // Predicated region
        $region17: #{_forward_jit.1} parent=11 // pred_check
          %p148 = pneg %p72
        $region18: #{_forward_jit.1} parent=11 // pred_check_branch
          %150 = sbr.rel (%p148) target = $region20
        $region19: #{_forward_jit.1} parent=11 // pred_region
          _
        $region20: #{_forward_jit.1} parent=11 // pred_fallthru
          _
      $region12: #{_forward_jit.1} parent=5 // pred_fallthru
        _
      %p151 = scmp.lt.s32.totalorder %s13, 2
      // Predicated region
      $region21: #{_forward_jit.1} parent=5 // pred_check
        %p152 = pneg %p151
      $region22: #{_forward_jit.1} parent=5 // pred_check_branch
        %154 = sbr.rel (%p152) target = $region24
      $region23: #{_forward_jit.1} parent=5 // pred_region
        // Predicated region
        $region25: #{_forward_jit.1} parent=23 // pred_check
          %p155 = pneg %p94
        $region26: #{_forward_jit.1} parent=23 // pred_check_branch
          %157 = sbr.rel (%p155) target = $region28
        $region27: #{_forward_jit.1} parent=23 // pred_region
          %s158 = sand.u32 %s84, 1
          %s159 = scalar_lea.sflag [#allocation4], %s158
          %s160 = sand.u32 %s84, 1
          %s161 = smul.addr %s160, 128
          %s162 = scalar_lea.vmem [#allocation3], %s161
          %s164 = ssub.s32 2048, 2048
          %165 = vsyncadd %s159, %s164
          %s166 = smul.addr %s20, 16
          %s167 = sadd.s32 %s21, %s166
          %s168 = smul.addr %s167, 128
          %s169 = scalar_lea.hbm %s2, %s168
          %s170 = sshll.u32 %s162, 4
          %s171 = int_to_ptr.vmem [resolvable:$true] %s170
          %176 = dma.hbm_to_vmem [thread:$0]  %s169, 2048, %s171, %s159, 128, 128, 8
        $region28: #{_forward_jit.1} parent=23 // pred_fallthru
          _
      $region24: #{_forward_jit.1} parent=5 // pred_fallthru
        _
      %p177 = scmp.le.s32.totalorder 1, %s13
      %p178 = scmp.lt.s32.totalorder %s13, 3
      %p179 = pnand %p177, %p178
      %p180 = pneg %p179
      // Predicated region
      $region29: #{_forward_jit.1} parent=5 // pred_check
        _
      $region30: #{_forward_jit.1} parent=5 // pred_check_branch
        %182 = sbr.rel (%p179) target = $region32
      $region31: #{_forward_jit.1} parent=5 // pred_region
        %s183 = ssub.s32 %s13, 1
        %s184 = sand.u32 %s87, 1
        %s185 = scalar_lea.sflag [#allocation4], %s184
        %s186 = sand.u32 %s87, 1
        %s187 = smul.addr %s186, 128
        %s188 = scalar_lea.vmem [#allocation3], %s187
        // Predicated region
        $region33: #{_forward_jit.1} parent=31 // pred_check
          %p189 = pneg %p100
        $region34: #{_forward_jit.1} parent=31 // pred_check_branch
          %191 = sbr.rel (%p189) target = $region36
        $region35: #{_forward_jit.1} parent=31 // pred_region
          %192 = dma.done %s185, 2048
        $region36: #{_forward_jit.1} parent=31 // pred_fallthru
          _
        %p193 = scmp.lt.s32.totalorder %s23, 0
        %s194 = scalar_select %p193, %s23, 0
        %s195 = smul.addr %s194, 8
        %s196 = scalar_lea.vmem %s0, %s195
        %p197 = pneg %p51
        %p198 = pneg %p48
        %p199 = pneg %p72
        %p200 = pneg %p69
        %s201 = sand.u32 %s87, 1
        %s202 = scalar_lea.sflag [#allocation4], %s201
        %s203 = sand.u32 %s87, 1
        %s204 = smul.addr %s203, 128
        %s205 = scalar_lea.vmem [#allocation3], %s204
        %p206 = pneg %p100
        %p207 = pneg %p97
        %p208 = pneg %p126
        %p209 = pneg %p123
        %p210 = scmp.lt.s32.totalorder %s23, 0
        %s211 = scalar_select %p210, %s23, 0
        %s212 = smul.addr %s211, 8
        %s213 = scalar_lea.vmem %s0, %s212
        %s214 = smul.u32 %s23, 128
        %p215 = scmp.eq.s32.totalorder %s22, 0
        // Predicated region
        $region37: #{_forward_jit.1} parent=31 // pred_check
          %p216 = pneg %p215
        $region38: #{_forward_jit.1} parent=31 // pred_check_branch
          %218 = sbr.rel (%p216) target = $region40
        $region39: #{_forward_jit.1} parent=31 // pred_region
          %v219 = vld [vmem:[%s1] sm:$0xff]
          %v220 = vld [vmem:[%s188] sm:$0xff]
          %v221 = vld [vmem:[%s188 + $0x8] sm:$0xff]
          %v222 = vld [vmem:[%s188 + $0x10] sm:$0xff]
          %v223 = vld [vmem:[%s188 + $0x18] sm:$0xff]
          %v224 = vld [vmem:[%s188 + $0x20] sm:$0xff]
          %v225 = vld [vmem:[%s188 + $0x28] sm:$0xff]
          %v226 = vld [vmem:[%s188 + $0x30] sm:$0xff]
          %v227 = vld [vmem:[%s188 + $0x38] sm:$0xff]
          %v228 = vld [vmem:[%s188 + $0x40] sm:$0xff]
          %v229 = vld [vmem:[%s188 + $0x48] sm:$0xff]
          %v230 = vld [vmem:[%s188 + $0x50] sm:$0xff]
          %v231 = vld [vmem:[%s188 + $0x58] sm:$0xff]
          %v232 = vld [vmem:[%s188 + $0x60] sm:$0xff]
          %v233 = vld [vmem:[%s188 + $0x68] sm:$0xff]
          %v234 = vld [vmem:[%s188 + $0x70] sm:$0xff]
          %v235 = vld [vmem:[%s188 + $0x78] sm:$0xff]
          %236 = vmatprep.subr.mxu0 0.0
          %237 = vmatpush1.msra.mxu0 %v220
          %238 = vmatprep.subr.mxu0 0.0
          %239 = vmatpush1.msra.mxu0 %v221
          %240 = vmatprep.subr.mxu0 0.0
          %241 = vmatpush1.msra.mxu0 %v222
          %242 = vmatprep.subr.mxu0 0.0
          %243 = vmatpush1.msra.mxu0 %v223
          %244 = vmatprep.subr.mxu0 0.0
          %245 = vmatpush1.msra.mxu0 %v224
          %246 = vmatprep.subr.mxu0 0.0
          %247 = vmatpush1.msra.mxu0 %v225
          %248 = vmatprep.subr.mxu0 0.0
          %249 = vmatpush1.msra.mxu0 %v226
          %250 = vmatprep.subr.mxu0 0.0
          %251 = vmatpush1.msra.mxu0 %v227
          %252 = vmatprep.subr.mxu0 0.0
          %253 = vmatpush1.msra.mxu0 %v228
          %254 = vmatprep.subr.mxu0 0.0
          %255 = vmatpush1.msra.mxu0 %v229
          %256 = vmatprep.subr.mxu0 0.0
          %257 = vmatpush1.msra.mxu0 %v230
          %258 = vmatprep.subr.mxu0 0.0
          %259 = vmatpush1.msra.mxu0 %v231
          %260 = vmatprep.subr.mxu0 0.0
          %261 = vmatpush1.msra.mxu0 %v232
          %262 = vmatprep.subr.mxu0 0.0
          %263 = vmatpush1.msra.mxu0 %v233
          %264 = vmatprep.subr.mxu0 0.0
          %265 = vmatpush1.msra.mxu0 %v234
          %266 = vmatprep.subr.mxu0 0.0
          %267 = vmatpush1.msra.mxu0 %v235
          %268 = vmatprep.subr.mxu0 0.0
          %269 = vmatpush1.msra.mxu0 0.0
          %270 = vmatprep.subr.mxu0 0.0
          %271 = vmatpush1.msra.mxu0 0.0
          %272 = vmatprep.subr.mxu0 0.0
          %273 = vmatpush1.msra.mxu0 0.0
          %274 = vmatprep.subr.mxu0 0.0
          %275 = vmatpush1.msra.mxu0 0.0
          %276 = vmatprep.subr.mxu0 0.0
          %277 = vmatpush1.msra.mxu0 0.0
          %278 = vmatprep.subr.mxu0 0.0
          %279 = vmatpush1.msra.mxu0 0.0
          %280 = vmatprep.subr.mxu0 0.0
          %281 = vmatpush1.msra.mxu0 0.0
          %282 = vmatprep.subr.mxu0 0.0
          %283 = vmatpush1.msra.mxu0 0.0
          %284 = vmatprep.subr.mxu0 0.0
          %285 = vmatpush1.msra.mxu0 0.0
          %286 = vmatprep.subr.mxu0 0.0
          %287 = vmatpush1.msra.mxu0 0.0
          %288 = vmatprep.subr.mxu0 0.0
          %289 = vmatpush1.msra.mxu0 0.0
          %290 = vmatprep.subr.mxu0 0.0
          %291 = vmatpush1.msra.mxu0 0.0
          %292 = vmatprep.subr.mxu0 0.0
          %293 = vmatpush1.msra.mxu0 0.0
          %294 = vmatprep.subr.mxu0 0.0
          %295 = vmatpush1.msra.mxu0 0.0
          %296 = vmatprep.subr.mxu0 0.0
          %297 = vmatpush1.msra.mxu0 0.0
          %298 = vmatprep.subr.mxu0 0.0
          %299 = vmatpush1.msra.mxu0 0.0
          %300 = vmatprep.mubr.f32.mxu0 0.0
          %301 = vmatmul.mubr.f32.gmra.mrb[0].mxu0 %v219
          %v302 = vpop.f32.mrb[0].mxu0
          %v303 = vadd.f32 0.0, %v302
          %v304 = vpop.f32.mrb[0].mxu0
          %305 = vdwg.mxu0
          %v306 = vld [vmem:[%s213] sm:$0x1]
          %v307 = vld [vmem:[%s213 + $0x1] sm:$0x1]
          %v308 = vrot.slane %v303, 4
          %v309 = vadd.f32 %v303, %v308
          %v310 = vrot.slane %v309, 2
          %v311 = vadd.f32 %v309, %v310
          %v312 = vrot.slane %v311, 1
          %v313 = vadd.f32 %v311, %v312
          %v314 = vrcp.pop 8.0
          %v315 = vmul.f32 %v313, %v314
          %v316 = vsub.f32 %v303, %v315
          %v317 = vmul.f32 %v316, %v316
          %v318 = vrot.slane %v317, 4
          %v319 = vadd.f32 %v317, %v318
          %v320 = vrot.slane %v319, 2
          %v321 = vadd.f32 %v319, %v320
          %v322 = vrot.slane %v321, 1
          %v323 = vadd.f32 %v321, %v322
          %v324 = vmul.f32 %v323, %v314
          %v325 = vadd.f32 %v324, 1e-05
          %v326 = vrsqrt.pop %v325
          %v327 = vmul.f32 %v306, %v326
          %v328 = vlaneseq
          %v329 = vshrl.u32 %v328, 7
          %v330 = vsub.s32 0, %v329
          %v331 = vrot.slane %v327, %v330
          %v332 = vmul.f32 %v316, %v331
          %v333 = vlaneseq
          %v334 = vshrl.u32 %v333, 7
          %v335 = vsub.s32 0, %v334
          %v336 = vrot.slane %v307, %v335
          %v337 = vadd.f32 %v332, %v336
          %vm338 = vcmp.ge.f32.partialorder %v337, 0.0
          %v339 = vmul.f32 %v337, 0.1
          %v340 = vsel %vm338, %v337, %v339
          %s341 = sshra.s32 %s214, 7
          %s342 = sand.u32 %s214, 127
          %s343 = scalar_lea.vmem [#allocation2], %s341
          %344 = vst [vmem:[%s343] sm:$0xff] %v340
          %345 = vst [vmem:[#allocation6] sm:$0xff] %v340
        $region40: #{_forward_jit.1} parent=31 // pred_fallthru
          _
        %p346 = scmp.eq.s32.totalorder %s22, 1
        // Predicated region
        $region41: #{_forward_jit.1} parent=31 // pred_check
          %p347 = pneg %p346
        $region42: #{_forward_jit.1} parent=31 // pred_check_branch
          %349 = sbr.rel (%p347) target = $region44
        $region43: #{_forward_jit.1} parent=31 // pred_region
          %v350 = vld [vmem:[#allocation2] sm:$0xff]
          %v351 = vld [vmem:[%s188] sm:$0xff]
          %v352 = vld [vmem:[%s188 + $0x8] sm:$0xff]
          %v353 = vld [vmem:[%s188 + $0x10] sm:$0xff]
          %v354 = vld [vmem:[%s188 + $0x18] sm:$0xff]
          %v355 = vld [vmem:[%s188 + $0x20] sm:$0xff]
          %v356 = vld [vmem:[%s188 + $0x28] sm:$0xff]
          %v357 = vld [vmem:[%s188 + $0x30] sm:$0xff]
          %v358 = vld [vmem:[%s188 + $0x38] sm:$0xff]
          %v359 = vld [vmem:[%s188 + $0x40] sm:$0xff]
          %v360 = vld [vmem:[%s188 + $0x48] sm:$0xff]
          %v361 = vld [vmem:[%s188 + $0x50] sm:$0xff]
          %v362 = vld [vmem:[%s188 + $0x58] sm:$0xff]
          %v363 = vld [vmem:[%s188 + $0x60] sm:$0xff]
          %v364 = vld [vmem:[%s188 + $0x68] sm:$0xff]
          %v365 = vld [vmem:[%s188 + $0x70] sm:$0xff]
          %v366 = vld [vmem:[%s188 + $0x78] sm:$0xff]
          %367 = vmatprep.subr.mxu0 0.0
          %368 = vmatpush1.msra.mxu0 %v351
          %369 = vmatprep.subr.mxu0 0.0
          %370 = vmatpush1.msra.mxu0 %v352
          %371 = vmatprep.subr.mxu0 0.0
          %372 = vmatpush1.msra.mxu0 %v353
          %373 = vmatprep.subr.mxu0 0.0
          %374 = vmatpush1.msra.mxu0 %v354
          %375 = vmatprep.subr.mxu0 0.0
          %376 = vmatpush1.msra.mxu0 %v355
          %377 = vmatprep.subr.mxu0 0.0
          %378 = vmatpush1.msra.mxu0 %v356
          %379 = vmatprep.subr.mxu0 0.0
          %380 = vmatpush1.msra.mxu0 %v357
          %381 = vmatprep.subr.mxu0 0.0
          %382 = vmatpush1.msra.mxu0 %v358
          %383 = vmatprep.subr.mxu0 0.0
          %384 = vmatpush1.msra.mxu0 %v359
          %385 = vmatprep.subr.mxu0 0.0
          %386 = vmatpush1.msra.mxu0 %v360
          %387 = vmatprep.subr.mxu0 0.0
          %388 = vmatpush1.msra.mxu0 %v361
          %389 = vmatprep.subr.mxu0 0.0
          %390 = vmatpush1.msra.mxu0 %v362
          %391 = vmatprep.subr.mxu0 0.0
          %392 = vmatpush1.msra.mxu0 %v363
          %393 = vmatprep.subr.mxu0 0.0
          %394 = vmatpush1.msra.mxu0 %v364
          %395 = vmatprep.subr.mxu0 0.0
          %396 = vmatpush1.msra.mxu0 %v365
          %397 = vmatprep.subr.mxu0 0.0
          %398 = vmatpush1.msra.mxu0 %v366
          %399 = vmatprep.subr.mxu0 0.0
          %400 = vmatpush1.msra.mxu0 0.0
          %401 = vmatprep.subr.mxu0 0.0
          %402 = vmatpush1.msra.mxu0 0.0
          %403 = vmatprep.subr.mxu0 0.0
          %404 = vmatpush1.msra.mxu0 0.0
          %405 = vmatprep.subr.mxu0 0.0
          %406 = vmatpush1.msra.mxu0 0.0
          %407 = vmatprep.subr.mxu0 0.0
          %408 = vmatpush1.msra.mxu0 0.0
          %409 = vmatprep.subr.mxu0 0.0
          %410 = vmatpush1.msra.mxu0 0.0
          %411 = vmatprep.subr.mxu0 0.0
          %412 = vmatpush1.msra.mxu0 0.0
          %413 = vmatprep.subr.mxu0 0.0
          %414 = vmatpush1.msra.mxu0 0.0
          %415 = vmatprep.subr.mxu0 0.0
          %416 = vmatpush1.msra.mxu0 0.0
          %417 = vmatprep.subr.mxu0 0.0
          %418 = vmatpush1.msra.mxu0 0.0
          %419 = vmatprep.subr.mxu0 0.0
          %420 = vmatpush1.msra.mxu0 0.0
          %421 = vmatprep.subr.mxu0 0.0
          %422 = vmatpush1.msra.mxu0 0.0
          %423 = vmatprep.subr.mxu0 0.0
          %424 = vmatpush1.msra.mxu0 0.0
          %425 = vmatprep.subr.mxu0 0.0
          %426 = vmatpush1.msra.mxu0 0.0
          %427 = vmatprep.subr.mxu0 0.0
          %428 = vmatpush1.msra.mxu0 0.0
          %429 = vmatprep.subr.mxu0 0.0
          %430 = vmatpush1.msra.mxu0 0.0
          %431 = vmatprep.mubr.f32.mxu0 0.0
          %432 = vmatmul.mubr.f32.gmra.mrb[0].mxu0 %v350
          %v433 = vpop.f32.mrb[0].mxu0
          %v434 = vadd.f32 0.0, %v433
          %v435 = vpop.f32.mrb[0].mxu0
          %436 = vdwg.mxu0
          %v437 = vld [vmem:[%s213 + $0x2] sm:$0x1]
          %v438 = vld [vmem:[%s213 + $0x3] sm:$0x1]
          %v439 = vrot.slane %v434, 4
          %v440 = vadd.f32 %v434, %v439
          %v441 = vrot.slane %v440, 2
          %v442 = vadd.f32 %v440, %v441
          %v443 = vrot.slane %v442, 1
          %v444 = vadd.f32 %v442, %v443
          %v445 = vrcp.pop 8.0
          %v446 = vmul.f32 %v444, %v445
          %v447 = vsub.f32 %v434, %v446
          %v448 = vmul.f32 %v447, %v447
          %v449 = vrot.slane %v448, 4
          %v450 = vadd.f32 %v448, %v449
          %v451 = vrot.slane %v450, 2
          %v452 = vadd.f32 %v450, %v451
          %v453 = vrot.slane %v452, 1
          %v454 = vadd.f32 %v452, %v453
          %v455 = vmul.f32 %v454, %v445
          %v456 = vadd.f32 %v455, 1e-05
          %v457 = vrsqrt.pop %v456
          %v458 = vmul.f32 %v437, %v457
          %v459 = vlaneseq
          %v460 = vshrl.u32 %v459, 7
          %v461 = vsub.s32 0, %v460
          %v462 = vrot.slane %v458, %v461
          %v463 = vmul.f32 %v447, %v462
          %v464 = vlaneseq
          %v465 = vshrl.u32 %v464, 7
          %v466 = vsub.s32 0, %v465
          %v467 = vrot.slane %v438, %v466
          %v468 = vadd.f32 %v463, %v467
          %s469 = sshra.s32 %s214, 7
          %s470 = sand.u32 %s214, 127
          %s471 = scalar_lea.vmem %s1, %s469
          %v472 = vld [vmem:[%s471] sm:$0xff]
          %v473 = vadd.f32 %v472, %v468
          %vm474 = vcmp.ge.f32.partialorder %v473, 0.0
          %v475 = vmul.f32 %v473, 0.1
          %v476 = vsel %vm474, %v473, %v475
          %477 = vst [vmem:[#allocation6] sm:$0xff] %v476
        $region44: #{_forward_jit.1} parent=31 // pred_fallthru
          _
        // Predicated region
        $region45: #{_forward_jit.1} parent=31 // pred_check
          %p478 = pneg %p123
        $region46: #{_forward_jit.1} parent=31 // pred_check_branch
          %480 = sbr.rel (%p478) target = $region48
        $region47: #{_forward_jit.1} parent=31 // pred_region
          %s482 = ssub.s32 128, 128
          %483 = vsyncadd [#allocation5], %s482
          %s484 = smul.addr %s23, 128
          %s485 = scalar_lea.hbm %s3, %s484
          %s487 = sshll.u32 [#allocation6], 4
          %s488 = int_to_ptr.vmem [resolvable:$true] %s487
          %490 = dma.vmem_to_hbm [thread:$0]  %s488, 128, %s485, [#allocation5]
        $region48: #{_forward_jit.1} parent=31 // pred_fallthru
          _
        // Predicated region
        $region49: #{_forward_jit.1} parent=31 // pred_check
          %p491 = pneg %p123
        $region50: #{_forward_jit.1} parent=31 // pred_check_branch
          %493 = sbr.rel (%p491) target = $region52
        $region51: #{_forward_jit.1} parent=31 // pred_region
          %494 = dma.done [#allocation5], 128
        $region52: #{_forward_jit.1} parent=31 // pred_fallthru
          _
      $region32: #{_forward_jit.1} parent=5 // pred_fallthru
        _
      %p495 = scmp.le.s32.totalorder 2, %s13
      // Predicated region
      $region53: #{_forward_jit.1} parent=5 // pred_check
        %p496 = pneg %p495
      $region54: #{_forward_jit.1} parent=5 // pred_check_branch
        %498 = sbr.rel (%p496) target = $region56
      $region55: #{_forward_jit.1} parent=5 // pred_region
        %s499 = ssub.s32 %s13, 2
      $region56: #{_forward_jit.1} parent=5 // pred_fallthru
        _
    $region6: #{_forward_jit.1} parent=1 // loop_footer
      %s17 = sadd.s32 1, %s13
    $region7: #{_forward_jit.1} parent=1 // loop_footer_branch
      %12 = sbr.rel target = $region3
    $region8: #{_forward_jit.1} parent=1 // loop_exit
      _
    %500 = vsyncpa [#allocation4], 1
    %s501 = scalar_lea.sflag [#allocation4], 1
    %502 = vsyncpa %s501, 1
    %503 = vsyncpa [#allocation5], 1
    %s504 = scalar_lea.sflag [#allocation5], 1
    %505 = vsyncpa %s504, 1

</llo_original>
